<compile_context>
chip_gen: v7x
topology: tpu7x:2x2x1
jax: 0.10.0
libtpu: 0.0.40
codegen_flags: <defaults>
</compile_context>

<pallas_src>
import functools

import jax
import jax.numpy as jnp
import numpy as np
from jax import lax
from jax.experimental import pallas as pl
from jax.experimental.pallas import tpu as pltpu

# DeepCAD command-vocabulary convention: ['Line','Arc','Circle','EOS','SOL','Ext']
EOS_IDX = 3
N_COMMANDS = 6          # cfg.n_commands
ARGS_DIM = 256          # cfg.args_dim; self.args_dim = args_dim + 1 (unused in forward)

_LANES = 128
_SUBLANES = 8
# 512 sublane-rows * 128 lanes = 65,536 tokens per grid step.
# Per-step VMEM (bf16 logits): 6*512*128*2B = 0.75 MiB + packed int32 0.25 MiB,
# x2 double-buffered ~2 MiB -> far under scoped VMEM on v5e/v6e/v7x.
_MAX_SUBLANE_ROWS = 512


def _row_granularity(dtype):
    """Native-tile sublane rows for a dtype: f32 -> 8, bf16 -> 16, int8/fp8 -> 32."""
    return (_SUBLANES * 4) // jnp.dtype(dtype).itemsize


# ---------------------------------------------------------------------------
# Pallas kernel
# ---------------------------------------------------------------------------
def _cmd_loss_kernel(logits_ref, packed_ref, out_ref):
    """One grid step.

    logits_ref: (C, sub_rows, 128) producer dtype (bf16/f32), class-major.
    packed_ref: (sub_rows, 128) int32; label in [0,C) for visible tokens,
                -1 for padded / masked-out tokens.
    out_ref:    (1, 3, 128) f32 lane-wise partials [emd*mask, correct*mask, mask].
    """
    n_cls = logits_ref.shape[0]
    sub_rows = logits_ref.shape[1]
    rows = _row_granularity(logits_ref.dtype)     # chunk = native packing tile
    n_chunks = sub_rows // rows
    inv_c = 1.0 / n_cls

    def chunk(c, carry):
        emd_acc, corr_acc, mask_acc = carry
        r0 = pl.multiple_of(c * rows, rows)

        # Each class chunk is loaded exactly once; values stay vreg-resident
        # through the fused argmax + softmax + EMD pass.
        x = [logits_ref[j, pl.ds(r0, rows), :].astype(jnp.float32)
             for j in range(n_cls)]
        packed = packed_ref[pl.ds(r0, rows), :]                 # int32
        mask = (packed >= 0).astype(jnp.float32)

        # Row max + argmax on raw logits (softmax is monotone; strict '>' keeps
        # the first maximum, matching jnp/torch argmax tie-breaking).
        best = x[0]
        pred = jnp.zeros_like(packed)
        for j in range(1, n_cls):
            better = x[j] > best
            best = jnp.where(better, x[j], best)
            pred = jnp.where(better, jnp.int32(j), pred)

        # exp computed exactly once per class (fused softmax denominator).
        e = []
        denom = None
        for j in range(n_cls):
            ej = jnp.exp(x[j] - best)
            x[j] = None                                         # release live range
            e.append(ej)
            denom = ej if denom is None else denom + ej
        inv_denom = pl.reciprocal(denom, approx=True)           # EUP slot

        # Squared EMD with cum_true_j == (label <= j); no one-hot / cumsum slabs.
        cum_p = jnp.zeros_like(best)
        sq = jnp.zeros_like(best)
        for j in range(n_cls):
            cum_p = cum_p + e[j] * inv_denom
            e[j] = None
            cum_t = (packed <= j).astype(jnp.float32)
            d = cum_t - cum_p
            sq = sq + d * d
        emd = sq * inv_c

        correct = (pred == packed).astype(jnp.float32)
        return (emd_acc + emd * mask,
                corr_acc + correct * mask,
                mask_acc + mask)

    zero = jnp.zeros((rows, _LANES), jnp.float32)
    emd_acc, corr_acc, mask_acc = lax.fori_loop(0, n_chunks, chunk,
                                                (zero, zero, zero))

    # Cross-sublane reduce once per tile; cross-lane reduce + divides deferred
    # to a tiny XLA epilogue (keeps the grid axis fully parallel).
    out_ref[0] = jnp.concatenate(
        [jnp.sum(emd_acc, axis=0, keepdims=True),
         jnp.sum(corr_acc, axis=0, keepdims=True),
         jnp.sum(mask_acc, axis=0, keepdims=True)], axis=0)


def _cmd_loss_pallas(logits_cnl, packed_nl, *, sub_rows):
    """logits_cnl: (C, NT, 128); packed_nl: (NT, 128); NT % sub_rows == 0."""
    n_cls, n_rows, _ = logits_cnl.shape
    n_tiles = n_rows // sub_rows
    partials = pl.pallas_call(
        _cmd_loss_kernel,
        out_shape=jax.ShapeDtypeStruct((n_tiles, 3, _LANES), jnp.float32),
        grid_spec=pltpu.PrefetchScalarGridSpec(
            num_scalar_prefetch=0,
            grid=(n_tiles,),
            in_specs=[
                pl.BlockSpec((n_cls, sub_rows, _LANES), lambda i: (0, i, 0)),
                pl.BlockSpec((sub_rows, _LANES), lambda i: (i, 0)),
            ],
            out_specs=pl.BlockSpec((1, 3, _LANES), lambda i: (i, 0, 0)),
        ),
        compiler_params=pltpu.CompilerParams(
            # Per-tile partial outputs, no cross-step state -> embarrassingly
            # parallel grid axis (dual-TensorCore sharding on v7x; neutral on
            # single-TC v5e/v6e).
            dimension_semantics=("parallel",),
        ),
    )(logits_cnl, packed_nl)

    sums = jnp.sum(partials, axis=(0, 2))          # (3,) f32
    count = jnp.maximum(sums[2], 1.0)              # all-padded divide-by-zero guard
    return sums[0] / count, sums[1] / count


# ---------------------------------------------------------------------------
# Mask helpers (DeepCAD-style) + layout plumbing, fused in one jit.
# ---------------------------------------------------------------------------
def _get_visibility_mask(commands):
    S = commands.shape[-1]
    n_eos = jnp.sum((commands == EOS_IDX).astype(jnp.int32), axis=-1)
    return (n_eos < S - 1).astype(jnp.float32)                        # (B,)


def _get_padding_mask(commands, extended=False):
    pm = (jnp.cumsum((commands == EOS_IDX).astype(jnp.int32), axis=-1) == 0)
    pm = pm.astype(jnp.float32)
    if extended:
        # extend by one position so the final EOS token participates in the loss
        shifted = jnp.concatenate([jnp.zeros_like(pm[..., :1]), pm[..., :-1]], axis=-1)
        pm = jnp.minimum(pm + shifted, 1.0)
    return pm                                                         # (B, S)


@functools.partial(jax.jit, static_argnames=("max_sub_rows", "relayout_dtype"))
def _command_loss_forward(command_logits, tgt_commands,
                          max_sub_rows=_MAX_SUBLANE_ROWS, relayout_dtype=None):
    # Mask construction fused into the same jit as the pallas_call.
    vis = _get_visibility_mask(tgt_commands)                          # (B,)
    pad = _get_padding_mask(tgt_commands, extended=True) * vis[..., None]  # (B, S)

    B, S, C = command_logits.shape
    n_tok = B * S

    # bf16 relayout intermediate for f32 producers: halves the relayout write
    # and the kernel read (wrapper + kernel are HBM-bound on v5e/v6e).
    if relayout_dtype is None:
        relayout_dtype = (jnp.bfloat16 if command_logits.dtype == jnp.float32
                          else command_logits.dtype)

    gran = _row_granularity(relayout_dtype)        # 8 (f32) / 16 (bf16) / 32 (int8)
    n_rows = -(-n_tok // _LANES)                   # ceil(n_tok / 128)
    max_rows = max(gran, (max_sub_rows // gran) * gran)
    sub_rows = min(max_rows, -(-n_rows // gran) * gran)
    n_rows_pad = -(-n_rows // sub_rows) * sub_rows
    n_pad = n_rows_pad * _LANES

    # Lane-dense relayout: classes -> leading axis; tokens fill full tiles.
    logits_cn = jnp.transpose(command_logits.reshape(n_tok, C).astype(relayout_dtype))
    if n_pad != n_tok:                             # skip the pad when already aligned
        logits_cn = jnp.pad(logits_cn, ((0, 0), (0, n_pad - n_tok)))
    logits_cnl = logits_cn.reshape(C, n_rows_pad, _LANES)

    # Pack label + mask into ONE int32 array (-1 == masked-out / padded token).
    labels = tgt_commands.reshape(n_tok).astype(jnp.int32)
    packed = jnp.where(pad.reshape(n_tok) > 0.5, labels, jnp.int32(-1))
    if n_pad != n_tok:
        packed = jnp.pad(packed, (0, n_pad - n_tok), constant_values=-1)
    packed_nl = packed.reshape(n_rows_pad, _LANES)

    return _cmd_loss_pallas(logits_cnl, packed_nl, sub_rows=sub_rows)


class CommandLoss:
    """JAX/Pallas equivalent of the PyTorch Command_loss forward."""

    def __init__(self, n_commands=N_COMMANDS, args_dim=ARGS_DIM):
        self.n_commands = n_commands
        self.args_dim = args_dim + 1   # parity with the PyTorch module (unused)

    def __call__(self, command_logits, tgt_commands, mask=None):
        # `mask` argument is accepted but unused, matching the PyTorch forward.
        assert command_logits.shape[-1] == self.n_commands
        return _command_loss_forward(command_logits, tgt_commands,
                                     max_sub_rows=_MAX_SUBLANE_ROWS)


# ---------------------------------------------------------------------------
# Pure-JAX reference (mirrors the PyTorch code) for a self-check.
# ---------------------------------------------------------------------------
def _reference(command_logits, tgt_commands):
    vis = _get_visibility_mask(tgt_commands)
    pad = _get_padding_mask(tgt_commands, extended=True) * vis[..., None]
    sel = pad.reshape(-1) > 0.5
    logits = command_logits.reshape(-1, command_logits.shape[-1])[sel]
    labels = tgt_commands.reshape(-1)[sel]
    y_pred = jax.nn.softmax(logits, axis=-1)
    y_true = jax.nn.one_hot(labels, command_logits.shape[-1], dtype=jnp.float32)
    tmp = jnp.mean(jnp.square(jnp.cumsum(y_true, -1) - jnp.cumsum(y_pred, -1)), -1)
    loss = jnp.sum(tmp) / tmp.shape[0]
    acc = jnp.mean((jnp.argmax(y_pred, -1) == labels).astype(jnp.float32))
    return loss, acc


def _make_inputs(key, B, S):
    k1, k2 = jax.random.split(key)
    logits = jax.random.normal(k1, (B, S, N_COMMANDS), dtype=jnp.float32)
    # commands among {Line, Arc, Circle}, padded with EOS from position 5 on
    cmds = jax.random.randint(k2, (B, S), 0, 3, dtype=jnp.int32)
    pos = jnp.arange(S)
    cmds = jnp.where(pos[None, :] >= 5, EOS_IDX, cmds)
    return logits, cmds


if __name__ == "__main__":
    loss_fn = CommandLoss()

    # --- primary small-shape check (single grid step, bf16 relayout) ---------
    B, S = 2, 8
    command_logits, tgt_commands = _make_inputs(jax.random.PRNGKey(0), B, S)
    mask_unused = jnp.ones((B, S), dtype=jnp.float32)

    loss, acc = loss_fn(command_logits, tgt_commands, mask_unused)
    loss = jax.block_until_ready(loss)
    acc = jax.block_until_ready(acc)

    # The HBM relayout is bf16 (perf choice); compare against the reference
    # evaluated on the same bf16-rounded logits so the check isolates kernel
    # correctness.  approx-reciprocal contributes <~1e-3 relative on the loss.
    logits_q = command_logits.astype(jnp.bfloat16).astype(jnp.float32)
    ref_loss, ref_acc = _reference(logits_q, tgt_commands)
    assert np.allclose(np.asarray(loss), np.asarray(ref_loss),
                       atol=2e-3, rtol=2e-3), (loss, ref_loss)
    assert np.allclose(np.asarray(acc), np.asarray(ref_acc), atol=1e-6), (acc, ref_acc)

    # --- multi-tile check: >1 grid steps, per-tile partials + XLA reduce -----
    B2, S2 = 2, 2048            # 4096 tokens -> 32 lane-rows; sub_rows=16 -> grid=2
    logits2, cmds2 = _make_inputs(jax.random.PRNGKey(1), B2, S2)
    loss2, acc2 = _command_loss_forward(logits2, cmds2, max_sub_rows=16)
    loss2 = jax.block_until_ready(loss2)
    acc2 = jax.block_until_ready(acc2)
    logits2_q = logits2.astype(jnp.bfloat16).astype(jnp.float32)
    ref_loss2, ref_acc2 = _reference(logits2_q, cmds2)
    assert np.allclose(np.asarray(loss2), np.asarray(ref_loss2),
                       atol=2e-3, rtol=2e-3), (loss2, ref_loss2)
    assert np.allclose(np.asarray(acc2), np.asarray(ref_acc2), atol=1e-6), (acc2, ref_acc2)

    # --- exact-dtype path (relayout kept in f32) smoke check -----------------
    loss3, acc3 = _command_loss_forward(command_logits, tgt_commands,
                                        relayout_dtype=jnp.float32)
    loss3 = jax.block_until_ready(loss3)
    acc3 = jax.block_until_ready(acc3)
    ref_loss3, ref_acc3 = _reference(command_logits, tgt_commands)
    assert np.allclose(np.asarray(loss3), np.asarray(ref_loss3),
                       atol=2e-3, rtol=2e-3), (loss3, ref_loss3)
    assert np.allclose(np.asarray(acc3), np.asarray(ref_acc3), atol=1e-6), (acc3, ref_acc3)

    print("KERNEL_OK")
</pallas_src>

<mosaic_0001>
module attributes {stable_mosaic.version = 11 : i64} {
  func.func @_cmd_loss_kernel(%arg0: i32, %arg1: memref<6x16x128xbf16, #tpu.memory_space<vmem>>, %arg2: memref<16x128xi32, #tpu.memory_space<vmem>>, %arg3: memref<1x3x128xf32, #tpu.memory_space<vmem>>) attributes {dimension_semantics = [#tpu.dimension_semantics<parallel>], iteration_bounds = array<i64: 1>, scalar_prefetch = 0 : i64, scratch_operands = 0 : i64, tpu.core_type = #tpu.core_type<tc>, window_params = [{transform_indices = @transform_0, window_bounds = array<i64: 6, 16, 128>}, {transform_indices = @transform_1, window_bounds = array<i64: 16, 128>}, {transform_indices = @transform_2, window_bounds = array<i64: 1, 3, 128>}]} {
    %cst = arith.constant 0.000000e+00 : f32
    %0 = vector.broadcast %cst : f32 to vector<16x128xf32>
    %c0_i32 = arith.constant 0 : i32
    %c16_i32 = arith.constant 16 : i32
    %1 = arith.muli %c0_i32, %c16_i32 : i32
    %2 = tpu.assume_multiple %1, 16 : i32
    %c0 = arith.constant 0 : index
    %3 = arith.index_cast %2 : i32 to index
    %c0_0 = arith.constant 0 : index
    %4 = vector.load %arg1[%c0, %3, %c0_0] : memref<6x16x128xbf16, #tpu.memory_space<vmem>>, vector<1x16x128xbf16>
    %5 = vector.shape_cast %4 : vector<1x16x128xbf16> to vector<16x128xbf16>
    %6 = arith.extf %5 : vector<16x128xbf16> to vector<16x128xf32>
    %c1 = arith.constant 1 : index
    %7 = arith.index_cast %2 : i32 to index
    %c0_1 = arith.constant 0 : index
    %8 = vector.load %arg1[%c1, %7, %c0_1] : memref<6x16x128xbf16, #tpu.memory_space<vmem>>, vector<1x16x128xbf16>
    %9 = vector.shape_cast %8 : vector<1x16x128xbf16> to vector<16x128xbf16>
    %10 = arith.extf %9 : vector<16x128xbf16> to vector<16x128xf32>
    %c2 = arith.constant 2 : index
    %11 = arith.index_cast %2 : i32 to index
    %c0_2 = arith.constant 0 : index
    %12 = vector.load %arg1[%c2, %11, %c0_2] : memref<6x16x128xbf16, #tpu.memory_space<vmem>>, vector<1x16x128xbf16>
    %13 = vector.shape_cast %12 : vector<1x16x128xbf16> to vector<16x128xbf16>
    %14 = arith.extf %13 : vector<16x128xbf16> to vector<16x128xf32>
    %c3 = arith.constant 3 : index
    %15 = arith.index_cast %2 : i32 to index
    %c0_3 = arith.constant 0 : index
    %16 = vector.load %arg1[%c3, %15, %c0_3] : memref<6x16x128xbf16, #tpu.memory_space<vmem>>, vector<1x16x128xbf16>
    %17 = vector.shape_cast %16 : vector<1x16x128xbf16> to vector<16x128xbf16>
    %18 = arith.extf %17 : vector<16x128xbf16> to vector<16x128xf32>
    %c4 = arith.constant 4 : index
    %19 = arith.index_cast %2 : i32 to index
    %c0_4 = arith.constant 0 : index
    %20 = vector.load %arg1[%c4, %19, %c0_4] : memref<6x16x128xbf16, #tpu.memory_space<vmem>>, vector<1x16x128xbf16>
    %21 = vector.shape_cast %20 : vector<1x16x128xbf16> to vector<16x128xbf16>
    %22 = arith.extf %21 : vector<16x128xbf16> to vector<16x128xf32>
    %c5 = arith.constant 5 : index
    %23 = arith.index_cast %2 : i32 to index
    %c0_5 = arith.constant 0 : index
    %24 = vector.load %arg1[%c5, %23, %c0_5] : memref<6x16x128xbf16, #tpu.memory_space<vmem>>, vector<1x16x128xbf16>
    %25 = vector.shape_cast %24 : vector<1x16x128xbf16> to vector<16x128xbf16>
    %26 = arith.extf %25 : vector<16x128xbf16> to vector<16x128xf32>
    %27 = arith.index_cast %2 : i32 to index
    %c0_6 = arith.constant 0 : index
    %28 = vector.load %arg2[%27, %c0_6] : memref<16x128xi32, #tpu.memory_space<vmem>>, vector<16x128xi32>
    %c0_i32_7 = arith.constant 0 : i32
    %29 = vector.broadcast %c0_i32_7 : i32 to vector<16x128xi32>
    %30 = arith.cmpi sge, %28, %29 : vector<16x128xi32>
    %31 = arith.extui %30 : vector<16x128xi1> to vector<16x128xi32>
    %32 = arith.sitofp %31 : vector<16x128xi32> to vector<16x128xf32>
    %c0_i32_8 = arith.constant 0 : i32
    %33 = vector.broadcast %c0_i32_8 : i32 to vector<16x128xi32>
    %34 = arith.cmpf ogt, %10, %6 : vector<16x128xf32>
    %35 = arith.select %34, %10, %6 : vector<16x128xi1>, vector<16x128xf32>
    %c1_i32 = arith.constant 1 : i32
    %36 = vector.broadcast %c1_i32 : i32 to vector<16x128xi32>
    %37 = arith.select %34, %36, %33 : vector<16x128xi1>, vector<16x128xi32>
    %38 = arith.cmpf ogt, %14, %35 : vector<16x128xf32>
    %39 = arith.select %38, %14, %35 : vector<16x128xi1>, vector<16x128xf32>
    %c2_i32 = arith.constant 2 : i32
    %40 = vector.broadcast %c2_i32 : i32 to vector<16x128xi32>
    %41 = arith.select %38, %40, %37 : vector<16x128xi1>, vector<16x128xi32>
    %42 = arith.cmpf ogt, %18, %39 : vector<16x128xf32>
    %43 = arith.select %42, %18, %39 : vector<16x128xi1>, vector<16x128xf32>
    %c3_i32 = arith.constant 3 : i32
    %44 = vector.broadcast %c3_i32 : i32 to vector<16x128xi32>
    %45 = arith.select %42, %44, %41 : vector<16x128xi1>, vector<16x128xi32>
    %46 = arith.cmpf ogt, %22, %43 : vector<16x128xf32>
    %47 = arith.select %46, %22, %43 : vector<16x128xi1>, vector<16x128xf32>
    %c4_i32 = arith.constant 4 : i32
    %48 = vector.broadcast %c4_i32 : i32 to vector<16x128xi32>
    %49 = arith.select %46, %48, %45 : vector<16x128xi1>, vector<16x128xi32>
    %50 = arith.cmpf ogt, %26, %47 : vector<16x128xf32>
    %51 = arith.select %50, %26, %47 : vector<16x128xi1>, vector<16x128xf32>
    %c5_i32 = arith.constant 5 : i32
    %52 = vector.broadcast %c5_i32 : i32 to vector<16x128xi32>
    %53 = arith.select %50, %52, %49 : vector<16x128xi1>, vector<16x128xi32>
    %54 = arith.subf %6, %51 : vector<16x128xf32>
    %55 = math.exp %54 : vector<16x128xf32>
    %56 = arith.subf %10, %51 : vector<16x128xf32>
    %57 = math.exp %56 : vector<16x128xf32>
    %58 = arith.addf %55, %57 : vector<16x128xf32>
    %59 = arith.subf %14, %51 : vector<16x128xf32>
    %60 = math.exp %59 : vector<16x128xf32>
    %61 = arith.addf %58, %60 : vector<16x128xf32>
    %62 = arith.subf %18, %51 : vector<16x128xf32>
    %63 = math.exp %62 : vector<16x128xf32>
    %64 = arith.addf %61, %63 : vector<16x128xf32>
    %65 = arith.subf %22, %51 : vector<16x128xf32>
    %66 = math.exp %65 : vector<16x128xf32>
    %67 = arith.addf %64, %66 : vector<16x128xf32>
    %68 = arith.subf %26, %51 : vector<16x128xf32>
    %69 = math.exp %68 : vector<16x128xf32>
    %70 = arith.addf %67, %69 : vector<16x128xf32>
    %71 = tpu.reciprocal %70 {approx = true} : vector<16x128xf32> -> vector<16x128xf32>
    %cst_9 = arith.constant 0.000000e+00 : f32
    %72 = vector.broadcast %cst_9 : f32 to vector<16x128xf32>
    %cst_10 = arith.constant 0.000000e+00 : f32
    %73 = vector.broadcast %cst_10 : f32 to vector<16x128xf32>
    %74 = arith.mulf %55, %71 : vector<16x128xf32>
    %75 = arith.addf %72, %74 : vector<16x128xf32>
    %c0_i32_11 = arith.constant 0 : i32
    %76 = vector.broadcast %c0_i32_11 : i32 to vector<16x128xi32>
    %77 = arith.cmpi sle, %28, %76 : vector<16x128xi32>
    %78 = arith.extui %77 : vector<16x128xi1> to vector<16x128xi32>
    %79 = arith.sitofp %78 : vector<16x128xi32> to vector<16x128xf32>
    %80 = arith.subf %79, %75 : vector<16x128xf32>
    %81 = arith.mulf %80, %80 : vector<16x128xf32>
    %82 = arith.addf %73, %81 : vector<16x128xf32>
    %83 = arith.mulf %57, %71 : vector<16x128xf32>
    %84 = arith.addf %75, %83 : vector<16x128xf32>
    %c1_i32_12 = arith.constant 1 : i32
    %85 = vector.broadcast %c1_i32_12 : i32 to vector<16x128xi32>
    %86 = arith.cmpi sle, %28, %85 : vector<16x128xi32>
    %87 = arith.extui %86 : vector<16x128xi1> to vector<16x128xi32>
    %88 = arith.sitofp %87 : vector<16x128xi32> to vector<16x128xf32>
    %89 = arith.subf %88, %84 : vector<16x128xf32>
    %90 = arith.mulf %89, %89 : vector<16x128xf32>
    %91 = arith.addf %82, %90 : vector<16x128xf32>
    %92 = arith.mulf %60, %71 : vector<16x128xf32>
    %93 = arith.addf %84, %92 : vector<16x128xf32>
    %c2_i32_13 = arith.constant 2 : i32
    %94 = vector.broadcast %c2_i32_13 : i32 to vector<16x128xi32>
    %95 = arith.cmpi sle, %28, %94 : vector<16x128xi32>
    %96 = arith.extui %95 : vector<16x128xi1> to vector<16x128xi32>
    %97 = arith.sitofp %96 : vector<16x128xi32> to vector<16x128xf32>
    %98 = arith.subf %97, %93 : vector<16x128xf32>
    %99 = arith.mulf %98, %98 : vector<16x128xf32>
    %100 = arith.addf %91, %99 : vector<16x128xf32>
    %101 = arith.mulf %63, %71 : vector<16x128xf32>
    %102 = arith.addf %93, %101 : vector<16x128xf32>
    %c3_i32_14 = arith.constant 3 : i32
    %103 = vector.broadcast %c3_i32_14 : i32 to vector<16x128xi32>
    %104 = arith.cmpi sle, %28, %103 : vector<16x128xi32>
    %105 = arith.extui %104 : vector<16x128xi1> to vector<16x128xi32>
    %106 = arith.sitofp %105 : vector<16x128xi32> to vector<16x128xf32>
    %107 = arith.subf %106, %102 : vector<16x128xf32>
    %108 = arith.mulf %107, %107 : vector<16x128xf32>
    %109 = arith.addf %100, %108 : vector<16x128xf32>
    %110 = arith.mulf %66, %71 : vector<16x128xf32>
    %111 = arith.addf %102, %110 : vector<16x128xf32>
    %c4_i32_15 = arith.constant 4 : i32
    %112 = vector.broadcast %c4_i32_15 : i32 to vector<16x128xi32>
    %113 = arith.cmpi sle, %28, %112 : vector<16x128xi32>
    %114 = arith.extui %113 : vector<16x128xi1> to vector<16x128xi32>
    %115 = arith.sitofp %114 : vector<16x128xi32> to vector<16x128xf32>
    %116 = arith.subf %115, %111 : vector<16x128xf32>
    %117 = arith.mulf %116, %116 : vector<16x128xf32>
    %118 = arith.addf %109, %117 : vector<16x128xf32>
    %119 = arith.mulf %69, %71 : vector<16x128xf32>
    %120 = arith.addf %111, %119 : vector<16x128xf32>
    %c5_i32_16 = arith.constant 5 : i32
    %121 = vector.broadcast %c5_i32_16 : i32 to vector<16x128xi32>
    %122 = arith.cmpi sle, %28, %121 : vector<16x128xi32>
    %123 = arith.extui %122 : vector<16x128xi1> to vector<16x128xi32>
    %124 = arith.sitofp %123 : vector<16x128xi32> to vector<16x128xf32>
    %125 = arith.subf %124, %120 : vector<16x128xf32>
    %126 = arith.mulf %125, %125 : vector<16x128xf32>
    %127 = arith.addf %118, %126 : vector<16x128xf32>
    %cst_17 = arith.constant 0.166666672 : f32
    %128 = vector.broadcast %cst_17 : f32 to vector<16x128xf32>
    %129 = arith.mulf %127, %128 : vector<16x128xf32>
    %130 = arith.cmpi eq, %53, %28 : vector<16x128xi32>
    %131 = arith.extui %130 : vector<16x128xi1> to vector<16x128xi32>
    %132 = arith.sitofp %131 : vector<16x128xi32> to vector<16x128xf32>
    %133 = arith.mulf %129, %32 : vector<16x128xf32>
    %134 = arith.addf %0, %133 : vector<16x128xf32>
    %135 = arith.mulf %132, %32 : vector<16x128xf32>
    %136 = arith.addf %0, %135 : vector<16x128xf32>
    %137 = arith.addf %0, %32 : vector<16x128xf32>
    %c1_i32_18 = arith.constant 1 : i32
    %cst_19 = arith.constant dense<0.000000e+00> : vector<128xf32>
    %138 = vector.multi_reduction <add>, %134, %cst_19 [0] : vector<16x128xf32> to vector<128xf32>
    %139 = vector.shape_cast %138 : vector<128xf32> to vector<1x128xf32>
    %cst_20 = arith.constant dense<0.000000e+00> : vector<128xf32>
    %140 = vector.multi_reduction <add>, %136, %cst_20 [0] : vector<16x128xf32> to vector<128xf32>
    %141 = vector.shape_cast %140 : vector<128xf32> to vector<1x128xf32>
    %cst_21 = arith.constant dense<0.000000e+00> : vector<128xf32>
    %142 = vector.multi_reduction <add>, %137, %cst_21 [0] : vector<16x128xf32> to vector<128xf32>
    %143 = vector.shape_cast %142 : vector<128xf32> to vector<1x128xf32>
    %144 = tpu.concatenate %139, %141, %143 in 0 : vector<1x128xf32>, vector<1x128xf32>, vector<1x128xf32> -> vector<3x128xf32>
    %c0_22 = arith.constant 0 : index
    %c0_23 = arith.constant 0 : index
    %c0_24 = arith.constant 0 : index
    %145 = vector.load %arg3[%c0_22, %c0_23, %c0_24] : memref<1x3x128xf32, #tpu.memory_space<vmem>>, vector<1x3x128xf32>
    %146 = vector.shape_cast %145 : vector<1x3x128xf32> to vector<3x128xf32>
    %147 = vector.shape_cast %144 : vector<3x128xf32> to vector<1x3x128xf32>
    tpu.vector_store %arg3[%c0_22, %c0_23, %c0_24], %147 {strides = array<i32>} : memref<1x3x128xf32, #tpu.memory_space<vmem>>, vector<1x3x128xf32>,
    return
  }
  func.func @transform_0(%arg0: i32) -> (i32, i32, i32) {
    %c0_i32 = arith.constant 0 : i32
    %c0_i32_0 = arith.constant 0 : i32
    %c0_i32_1 = arith.constant 0 : i32
    return %c0_i32, %arg0, %c0_i32_0 : i32, i32, i32
  }
  func.func @transform_1(%arg0: i32) -> (i32, i32) {
    %c0_i32 = arith.constant 0 : i32
    %c0_i32_0 = arith.constant 0 : i32
    return %arg0, %c0_i32 : i32, i32
  }
  func.func @transform_2(%arg0: i32) -> (i32, i32, i32) {
    %c0_i32 = arith.constant 0 : i32
    %c0_i32_0 = arith.constant 0 : i32
    %c0_i32_1 = arith.constant 0 : i32
    return %arg0, %c0_i32, %c0_i32_0 : i32, i32, i32
  }
}

</mosaic_0001>

<llo_original>
// kernel: _command_loss_forward.1
$region0: #{_command_loss_forward.1}
  #allocation0 [shape = 'u32[]', space=smem, size = 0x4, offset = 0x4, fixed_abs, tag = 'smem constant byte address 0x4 - core index']
  #allocation1 [shape = 'u32[144,128]{1,0:T(1,128)}', space=vmem, size = 0x12000, scoped, tag = 'internal scratch']
  %s0 = inlined_call_operand.vmem [shape: bf16[6,16,128], index: 0, kind: input, shape index: {}]
  %s1 = inlined_call_operand.vmem [shape: s32[16,128], index: 1, kind: input, shape index: {}]
  %s2 = inlined_call_operand.vmem [shape: f32[1,3,128], index: 2, kind: output, shape index: {}]
  %s3 = sld [smem:[#allocation0]]
  $region18: #{_command_loss_forward.1} parent=0
    _
  %s5 = ssub.s32 1, %s3
  %s6 = scalar_select 0, %s5, %s3
  // Predicated region
  $region2: #{_command_loss_forward.1} parent=0 // pred_check
    _
  $region3: #{_command_loss_forward.1} parent=0 // pred_check_branch
    %8 = sbr.rel (0) target = $region5
  $region4: #{_command_loss_forward.1} parent=0 // pred_region
    _
  $region5: #{_command_loss_forward.1} parent=0 // pred_fallthru
    _
  // Predicated region
  $region6: #{_command_loss_forward.1} parent=0 // pred_check
    _
  $region7: #{_command_loss_forward.1} parent=0 // pred_check_branch
    %10 = sbr.rel (0) target = $region9
  $region8: #{_command_loss_forward.1} parent=0 // pred_region
    _
  $region9: #{_command_loss_forward.1} parent=0 // pred_fallthru
    _
  %v11 = vld [vmem:[%s0] sm:$0xf]
  %v12 = vld [vmem:[%s0 + $0x4] sm:$0xf]
  %v13 = vunpack.c.l.bf16 %v11
  %v14 = vunpack.c.l.bf16 %v12
  %s15 = sadd.s32 0, 2
  %s16 = smul.addr %s15, 4
  %s17 = scalar_lea.vmem %s0, %s16
  %v18 = vld [vmem:[%s17] sm:$0xf]
  %v19 = vld [vmem:[%s17 + $0x4] sm:$0xf]
  %v20 = vunpack.c.l.bf16 %v18
  %v21 = vunpack.c.l.bf16 %v19
  %s22 = sadd.s32 0, 4
  %s23 = smul.addr %s22, 4
  %s24 = scalar_lea.vmem %s0, %s23
  %v25 = vld [vmem:[%s24] sm:$0xf]
  %v26 = vld [vmem:[%s24 + $0x4] sm:$0xf]
  %v27 = vunpack.c.l.bf16 %v25
  %v28 = vunpack.c.l.bf16 %v26
  %s29 = sadd.s32 0, 6
  %s30 = smul.addr %s29, 4
  %s31 = scalar_lea.vmem %s0, %s30
  %v32 = vld [vmem:[%s31] sm:$0xf]
  %v33 = vld [vmem:[%s31 + $0x4] sm:$0xf]
  %v34 = vunpack.c.l.bf16 %v32
  %v35 = vunpack.c.l.bf16 %v33
  %s36 = sadd.s32 0, 8
  %s37 = smul.addr %s36, 4
  %s38 = scalar_lea.vmem %s0, %s37
  %v39 = vld [vmem:[%s38] sm:$0xf]
  %v40 = vld [vmem:[%s38 + $0x4] sm:$0xf]
  %v41 = vunpack.c.l.bf16 %v39
  %v42 = vunpack.c.l.bf16 %v40
  %s43 = sadd.s32 0, 10
  %s44 = smul.addr %s43, 4
  %s45 = scalar_lea.vmem %s0, %s44
  %v46 = vld [vmem:[%s45] sm:$0xf]
  %v47 = vld [vmem:[%s45 + $0x4] sm:$0xf]
  %v48 = vunpack.c.l.bf16 %v46
  %v49 = vunpack.c.l.bf16 %v47
  %v50 = vld [vmem:[%s1] sm:$0xff]
  %v51 = vld [vmem:[%s1 + $0x8] sm:$0xff]
  %vm52 = vcmp.ge.s32.totalorder %v50, 0
  %vm53 = vcmp.ge.s32.totalorder %v51, 0
  %v54 = vsel %vm52, 1, 0
  %v55 = vsel %vm53, 1, 0
  %v56 = vcvt.s32.f32 %v54
  %v57 = vcvt.s32.f32 %v55
  %vm58 = vcmp.gt.f32.partialorder %v20, %v13
  %vm59 = vcmp.gt.f32.partialorder %v21, %v14
  %v60 = vsel %vm58, %v20, %v13
  %v61 = vsel %vm59, %v21, %v14
  %v62 = vsel %vm58, 1, 0
  %v63 = vsel %vm59, 1, 0
  %vm64 = vcmp.gt.f32.partialorder %v27, %v60
  %vm65 = vcmp.gt.f32.partialorder %v28, %v61
  %v66 = vsel %vm64, %v27, %v60
  %v67 = vsel %vm65, %v28, %v61
  %v68 = vsel %vm64, 2, %v62
  %v69 = vsel %vm65, 2, %v63
  %vm70 = vcmp.gt.f32.partialorder %v34, %v66
  %vm71 = vcmp.gt.f32.partialorder %v35, %v67
  %v72 = vsel %vm70, %v34, %v66
  %v73 = vsel %vm71, %v35, %v67
  %v74 = vsel %vm70, 3, %v68
  %v75 = vsel %vm71, 3, %v69
  %vm76 = vcmp.gt.f32.partialorder %v41, %v72
  %vm77 = vcmp.gt.f32.partialorder %v42, %v73
  %v78 = vsel %vm76, %v41, %v72
  %v79 = vsel %vm77, %v42, %v73
  %v80 = vsel %vm76, 4, %v74
  %v81 = vsel %vm77, 4, %v75
  %vm82 = vcmp.gt.f32.partialorder %v48, %v78
  %vm83 = vcmp.gt.f32.partialorder %v49, %v79
  %v84 = vsel %vm82, %v48, %v78
  %v85 = vsel %vm83, %v49, %v79
  %v86 = vsel %vm82, 5, %v80
  %v87 = vsel %vm83, 5, %v81
  %v88 = vsub.f32 %v13, %v84
  %v89 = vsub.f32 %v14, %v85
  %v90 = vmul.f32 %v88, 1.442695
  %v91 = vpow.pop %v90
  %v92 = vmul.f32 %v89, 1.442695
  %v93 = vpow.pop %v92
  %v94 = vsub.f32 %v20, %v84
  %v95 = vsub.f32 %v21, %v85
  %v96 = vmul.f32 %v94, 1.442695
  %v97 = vpow.pop %v96
  %v98 = vmul.f32 %v95, 1.442695
  %v99 = vpow.pop %v98
  %v100 = vadd.f32 %v91, %v97
  %v101 = vadd.f32 %v93, %v99
  %v102 = vsub.f32 %v27, %v84
  %v103 = vsub.f32 %v28, %v85
  %v104 = vmul.f32 %v102, 1.442695
  %v105 = vpow.pop %v104
  %v106 = vmul.f32 %v103, 1.442695
  %v107 = vpow.pop %v106
  %v108 = vadd.f32 %v100, %v105
  %v109 = vadd.f32 %v101, %v107
  %v110 = vsub.f32 %v34, %v84
  %v111 = vsub.f32 %v35, %v85
  %v112 = vmul.f32 %v110, 1.442695
  %v113 = vpow.pop %v112
  %v114 = vmul.f32 %v111, 1.442695
  %v115 = vpow.pop %v114
  %v116 = vadd.f32 %v108, %v113
  %v117 = vadd.f32 %v109, %v115
  %v118 = vsub.f32 %v41, %v84
  %v119 = vsub.f32 %v42, %v85
  %v120 = vmul.f32 %v118, 1.442695
  %v121 = vpow.pop %v120
  %v122 = vmul.f32 %v119, 1.442695
  %v123 = vpow.pop %v122
  %v124 = vadd.f32 %v116, %v121
  %v125 = vadd.f32 %v117, %v123
  %v126 = vsub.f32 %v48, %v84
  %v127 = vsub.f32 %v49, %v85
  %v128 = vmul.f32 %v126, 1.442695
  %v129 = vpow.pop %v128
  %v130 = vmul.f32 %v127, 1.442695
  %v131 = vpow.pop %v130
  %v132 = vadd.f32 %v124, %v129
  %v133 = vadd.f32 %v125, %v131
  %v134 = vrcp.pop %v132
  %v135 = vrcp.pop %v133
  %v136 = vmul.f32 %v91, %v134
  %v137 = vmul.f32 %v93, %v135
  %v138 = vadd.f32 %v136, 0.0
  %v139 = vadd.f32 %v137, 0.0
  %vm140 = vcmp.le.s32.totalorder %v50, 0
  %vm141 = vcmp.le.s32.totalorder %v51, 0
  %v142 = vsel %vm140, 1, 0
  %v143 = vsel %vm141, 1, 0
  %v144 = vcvt.s32.f32 %v142
  %v145 = vcvt.s32.f32 %v143
  %v146 = vsub.f32 %v144, %v138
  %v147 = vsub.f32 %v145, %v139
  %v148 = vmul.f32 %v146, %v146
  %v149 = vmul.f32 %v147, %v147
  %v150 = vadd.f32 %v148, 0.0
  %v151 = vadd.f32 %v149, 0.0
  %v152 = vmul.f32 %v97, %v134
  %v153 = vmul.f32 %v99, %v135
  %v154 = vadd.f32 %v138, %v152
  %v155 = vadd.f32 %v139, %v153
  %vm156 = vcmp.le.s32.totalorder %v50, 1
  %vm157 = vcmp.le.s32.totalorder %v51, 1
  %v158 = vsel %vm156, 1, 0
  %v159 = vsel %vm157, 1, 0
  %v160 = vcvt.s32.f32 %v158
  %v161 = vcvt.s32.f32 %v159
  %v162 = vsub.f32 %v160, %v154
  %v163 = vsub.f32 %v161, %v155
  %v164 = vmul.f32 %v162, %v162
  %v165 = vmul.f32 %v163, %v163
  %v166 = vadd.f32 %v150, %v164
  %v167 = vadd.f32 %v151, %v165
  %v168 = vmul.f32 %v105, %v134
  %v169 = vmul.f32 %v107, %v135
  %v170 = vadd.f32 %v154, %v168
  %v171 = vadd.f32 %v155, %v169
  %vm172 = vcmp.le.s32.totalorder %v50, 2
  %vm173 = vcmp.le.s32.totalorder %v51, 2
  %v174 = vsel %vm172, 1, 0
  %v175 = vsel %vm173, 1, 0
  %v176 = vcvt.s32.f32 %v174
  %v177 = vcvt.s32.f32 %v175
  %v178 = vsub.f32 %v176, %v170
  %v179 = vsub.f32 %v177, %v171
  %v180 = vmul.f32 %v178, %v178
  %v181 = vmul.f32 %v179, %v179
  %v182 = vadd.f32 %v166, %v180
  %v183 = vadd.f32 %v167, %v181
  %v184 = vmul.f32 %v113, %v134
  %v185 = vmul.f32 %v115, %v135
  %v186 = vadd.f32 %v170, %v184
  %v187 = vadd.f32 %v171, %v185
  %vm188 = vcmp.le.s32.totalorder %v50, 3
  %vm189 = vcmp.le.s32.totalorder %v51, 3
  %v190 = vsel %vm188, 1, 0
  %v191 = vsel %vm189, 1, 0
  %v192 = vcvt.s32.f32 %v190
  %v193 = vcvt.s32.f32 %v191
  %v194 = vsub.f32 %v192, %v186
  %v195 = vsub.f32 %v193, %v187
  %v196 = vmul.f32 %v194, %v194
  %v197 = vmul.f32 %v195, %v195
  %v198 = vadd.f32 %v182, %v196
  %v199 = vadd.f32 %v183, %v197
  %v200 = vmul.f32 %v121, %v134
  %v201 = vmul.f32 %v123, %v135
  %v202 = vadd.f32 %v186, %v200
  %v203 = vadd.f32 %v187, %v201
  %vm204 = vcmp.le.s32.totalorder %v50, 4
  %vm205 = vcmp.le.s32.totalorder %v51, 4
  %v206 = vsel %vm204, 1, 0
  %v207 = vsel %vm205, 1, 0
  %v208 = vcvt.s32.f32 %v206
  %v209 = vcvt.s32.f32 %v207
  %v210 = vsub.f32 %v208, %v202
  %v211 = vsub.f32 %v209, %v203
  %v212 = vmul.f32 %v210, %v210
  %v213 = vmul.f32 %v211, %v211
  %v214 = vadd.f32 %v198, %v212
  %v215 = vadd.f32 %v199, %v213
  %v216 = vmul.f32 %v129, %v134
  %v217 = vmul.f32 %v131, %v135
  %v218 = vadd.f32 %v202, %v216
  %v219 = vadd.f32 %v203, %v217
  %vm220 = vcmp.le.s32.totalorder %v50, 5
  %vm221 = vcmp.le.s32.totalorder %v51, 5
  %v222 = vsel %vm220, 1, 0
  %v223 = vsel %vm221, 1, 0
  %v224 = vcvt.s32.f32 %v222
  %v225 = vcvt.s32.f32 %v223
  %v226 = vsub.f32 %v224, %v218
  %v227 = vsub.f32 %v225, %v219
  %v228 = vmul.f32 %v226, %v226
  %v229 = vmul.f32 %v227, %v227
  %v230 = vadd.f32 %v214, %v228
  %v231 = vadd.f32 %v215, %v229
  %v232 = vmul.f32 %v230, 0.16666667
  %v233 = vmul.f32 %v231, 0.16666667
  %vm234 = vcmp.eq.s32.totalorder %v86, %v50
  %vm235 = vcmp.eq.s32.totalorder %v87, %v51
  %v236 = vsel %vm234, 1, 0
  %v237 = vsel %vm235, 1, 0
  %v238 = vcvt.s32.f32 %v236
  %v239 = vcvt.s32.f32 %v237
  %v240 = vmul.f32 %v232, %v56
  %v241 = vmul.f32 %v233, %v57
  %v242 = vadd.f32 %v240, 0.0
  %v243 = vadd.f32 %v241, 0.0
  %v244 = vmul.f32 %v238, %v56
  %v245 = vmul.f32 %v239, %v57
  %v246 = vadd.f32 %v244, 0.0
  %v247 = vadd.f32 %v245, 0.0
  %v248 = vadd.f32 %v56, 0.0
  %v249 = vadd.f32 %v57, 0.0
  %v250 = vadd.f32 %v242, %v243
  %v251 = vrot.slane %v250, 4
  %v252 = vadd.f32 %v250, %v251
  %v253 = vrot.slane %v252, 2
  %v254 = vadd.f32 %v252, %v253
  %v255 = vrot.slane %v254, 1
  %v256 = vadd.f32 %v254, %v255
  %v257 = vadd.f32 %v246, %v247
  %v258 = vrot.slane %v257, 4
  %v259 = vadd.f32 %v257, %v258
  %v260 = vrot.slane %v259, 2
  %v261 = vadd.f32 %v259, %v260
  %v262 = vrot.slane %v261, 1
  %v263 = vadd.f32 %v261, %v262
  %v264 = vadd.f32 %v248, %v249
  %v265 = vrot.slane %v264, 4
  %v266 = vadd.f32 %v264, %v265
  %v267 = vrot.slane %v266, 2
  %v268 = vadd.f32 %v266, %v267
  %v269 = vrot.slane %v268, 1
  %v270 = vadd.f32 %v268, %v269
  %vm271 = vcmask 1040384
  %v272 = vsel %vm271, %v256, %v263
  %vm273 = vcmask 1041408
  %v274 = vsel %vm273, %v272, %v270
  %275 = vst [vmem:[%s2] sm:$0x7] %v274
  // Predicated region
  $region10: #{_command_loss_forward.1} parent=0 // pred_check
    _
  $region11: #{_command_loss_forward.1} parent=0 // pred_check_branch
    %277 = sbr.rel (0) target = $region13
  $region12: #{_command_loss_forward.1} parent=0 // pred_region
    _
  $region13: #{_command_loss_forward.1} parent=0 // pred_fallthru
    _
  // Predicated region
  $region14: #{_command_loss_forward.1} parent=0 // pred_check
    _
  $region15: #{_command_loss_forward.1} parent=0 // pred_check_branch
    %279 = sbr.rel (0) target = $region17
  $region16: #{_command_loss_forward.1} parent=0 // pred_region
    _
  $region17: #{_command_loss_forward.1} parent=0 // pred_fallthru
    _

</llo_original>
